<compile_context>
chip_gen: v5e
topology: v5e:2x2
jax: 0.10.0
libtpu: 0.0.40
codegen_flags: <defaults>
</compile_context>

<pallas_src>
import functools

import jax
import jax.numpy as jnp
from jax.experimental import pallas as pl
from jax.experimental.pallas import tpu as pltpu

BN_EPS = 1e-5


def _round_up(v, m):
    return (v + m - 1) // m * m


def _vmem_budget_bytes():
    """Generation-aware VMEM budget: ~75% of physical per-core VMEM."""
    phys = 64 * 1024 * 1024                      # conservative fallback (v7x per-TC)
    try:
        info = pltpu.get_tpu_info()
        phys = int(getattr(info, "vmem_capacity_bytes", phys) or phys)
    except Exception:
        pass
    return int((phys * 3) // 4)


# ---------------------------------------------------------------------------
# Small-N path: single launch, everything VMEM resident, f32, centered var.
# ---------------------------------------------------------------------------
def _fused_kernel(x_ref, w1_ref, b1_ref, g_ref, b_ref, w2_ref, b2_ref, o_ref,
                  *, use_bn):
    h = jnp.dot(x_ref[...], w1_ref[...], preferred_element_type=jnp.float32)
    h = h + b1_ref[...]
    if use_bn:
        # Centered two-pass variance (numerically robust); biased variance
        # matches BatchNorm1d training-mode normalization.
        mean = jnp.mean(h, axis=0, keepdims=True)
        var = jnp.mean((h - mean) ** 2, axis=0, keepdims=True)
        h = (h - mean) * jax.lax.rsqrt(var + BN_EPS)
        h = h * g_ref[...] + b_ref[...]
    h = jnp.maximum(h, 0.0)
    o_ref[...] = (jnp.dot(h, w2_ref[...], preferred_element_type=jnp.float32)
                  + b2_ref[...])


# ---------------------------------------------------------------------------
# Large-N path, pass 1: per-column sum / sum-of-squares of h = x @ W1.
# Leading size-2 "parallel" axis -> one partial accumulator per TensorCore
# (v7x megacore); partials are summed in XLA afterwards. b1 is deliberately
# NOT added: it cancels exactly under batch norm, and keeps padded (zero)
# rows from contributing to the statistics.
# ---------------------------------------------------------------------------
def _stats_kernel(x_ref, w1_ref, sum_ref, sumsq_ref):
    @pl.when(pl.program_id(1) == 0)
    def _():
        sum_ref[...] = jnp.zeros_like(sum_ref)
        sumsq_ref[...] = jnp.zeros_like(sumsq_ref)

    h = jnp.dot(x_ref[...], w1_ref[...], preferred_element_type=jnp.float32)
    sum_ref[...] += jnp.sum(h, axis=0, keepdims=True)[None]
    sumsq_ref[...] += jnp.sum(h * h, axis=0, keepdims=True)[None]


# ---------------------------------------------------------------------------
# Large-N path, pass 2: h = x @ W1, fused BN scale/shift (+ReLU), 2nd matmul.
# ---------------------------------------------------------------------------
def _apply_kernel(x_ref, w1_ref, scale_ref, shift_ref, w2_ref, b2_ref, o_ref):
    h = jnp.dot(x_ref[...], w1_ref[...], preferred_element_type=jnp.float32)
    h = jnp.maximum(h * scale_ref[...] + shift_ref[...], 0.0)
    o_ref[...] = (jnp.dot(h.astype(w2_ref.dtype), w2_ref[...],
                          preferred_element_type=jnp.float32) + b2_ref[...])


@functools.partial(jax.jit,
                   static_argnames=("use_bn", "block_rows", "force_two_pass"))
def mlp_forward(x, w1_t, b1, gamma, beta, w2_t, b2, *,
                use_bn=True, block_rows=2048, force_two_pass=False):
    n, nfeat = x.shape
    nhid = w1_t.shape[1]
    nclass = w2_t.shape[1]
    f32 = jnp.float32
    bf16 = jnp.bfloat16

    budget = _vmem_budget_bytes()

    b1v = b1.reshape(1, nhid).astype(f32)
    b2v = b2.reshape(1, nclass).astype(f32)
    gv = gamma.reshape(1, nhid).astype(f32)
    bv = beta.reshape(1, nhid).astype(f32)

    # VMEM estimates use (8,128)-rounded dims (Mosaic pads buffers to tiles).
    f_r = _round_up(nfeat, 128)
    h_r = _round_up(nhid, 128)
    c_r = _round_up(nclass, 128)
    n_r = _round_up(n, 8)

    # ---- small-N fused single-call path ------------------------------------
    fused_vmem = 4 * (2 * (n_r * f_r + f_r * h_r + h_r * c_r)
                      + 3 * n_r * h_r + 2 * n_r * c_r + 8 * (3 * h_r + c_r))
    if (not force_two_pass) and fused_vmem <= budget // 2:
        kern = functools.partial(_fused_kernel, use_bn=use_bn)
        return pl.pallas_call(
            kern,
            out_shape=jax.ShapeDtypeStruct((n, nclass), f32),
            grid=(1,),
            in_specs=[
                pl.BlockSpec((n, nfeat), lambda i: (0, 0)),
                pl.BlockSpec((nfeat, nhid), lambda i: (0, 0)),
                pl.BlockSpec((1, nhid), lambda i: (0, 0)),
                pl.BlockSpec((1, nhid), lambda i: (0, 0)),
                pl.BlockSpec((1, nhid), lambda i: (0, 0)),
                pl.BlockSpec((nhid, nclass), lambda i: (0, 0)),
                pl.BlockSpec((1, nclass), lambda i: (0, 0)),
            ],
            out_specs=pl.BlockSpec((n, nclass), lambda i: (0, 0)),
            compiler_params=pltpu.CompilerParams(
                dimension_semantics=("arbitrary",),
                vmem_limit_bytes=int(budget)),
        )(x.astype(f32), w1_t.astype(f32), b1v, gv, bv,
          w2_t.astype(f32), b2v)

    # ---- large-N tiled two-pass path (bf16 inputs, f32 accumulation) -------
    # Row tile sized against the budget; 2x buffers for the x/out tiles AND
    # for the VMEM-resident weights (Pallas double-buffers every input spec).
    per_row = 2 * f_r * 2 + 2 * c_r * 4 + h_r * (4 + 2)
    resident = 2 * 2 * (f_r * h_r + h_r * c_r) + 2 * 4 * (4 * h_r + 2 * c_r)
    tm_cap = max(8, ((budget - resident) // per_row) // 8 * 8)
    tm = int(max(8, min(block_rows, tm_cap, _round_up(n, 8))))
    n_p = _round_up(n, 2 * tm)            # even #tiles -> clean 2-core split
    n_tiles = n_p // tm
    half = n_tiles // 2

    # bf16 cast halves HBM traffic for x; the (row-only) zero pad is fused
    # into the same materialization. Padded rows add nothing to the stats.
    xp = x.astype(bf16)
    if n_p != n:
        xp = jnp.pad(xp, ((0, n_p - n), (0, 0)))
    w1c = w1_t.astype(bf16)
    w2c = w2_t.astype(bf16)

    if use_bn:
        psum, psumsq = pl.pallas_call(
            _stats_kernel,
            out_shape=(jax.ShapeDtypeStruct((2, 1, nhid), f32),
                       jax.ShapeDtypeStruct((2, 1, nhid), f32)),
            grid=(2, half),
            in_specs=[
                pl.BlockSpec((tm, nfeat), lambda c, i: (c * half + i, 0)),
                pl.BlockSpec((nfeat, nhid), lambda c, i: (0, 0)),
            ],
            out_specs=(
                pl.BlockSpec((1, 1, nhid), lambda c, i: (c, 0, 0)),
                pl.BlockSpec((1, 1, nhid), lambda c, i: (c, 0, 0)),
            ),
            compiler_params=pltpu.CompilerParams(
                dimension_semantics=("parallel", "arbitrary"),
                vmem_limit_bytes=int(budget)),
        )(xp, w1c)

        sum_h = jnp.sum(psum, axis=0)          # (1, nhid)
        sumsq_h = jnp.sum(psumsq, axis=0)
        mean = sum_h / n                       # divide by the REAL batch size
        # TODO(synk): E[h^2]-E[h]^2 can cancel when |mean| >> std; the fused
        # small-N path uses the centered formula instead.
        var = jnp.maximum(sumsq_h / n - mean * mean, 0.0)
        inv = jax.lax.rsqrt(var + BN_EPS)
        scale = gv * inv
        shift = bv - mean * scale              # b1 cancels exactly under BN
    else:
        scale = jnp.ones((1, nhid), f32)
        shift = b1v                            # keep Linear-bias semantics

    out_p = pl.pallas_call(
        _apply_kernel,
        out_shape=jax.ShapeDtypeStruct((n_p, nclass), f32),
        grid=(n_tiles,),
        in_specs=[
            pl.BlockSpec((tm, nfeat), lambda i: (i, 0)),
            pl.BlockSpec((nfeat, nhid), lambda i: (0, 0)),
            pl.BlockSpec((1, nhid), lambda i: (0, 0)),
            pl.BlockSpec((1, nhid), lambda i: (0, 0)),
            pl.BlockSpec((nhid, nclass), lambda i: (0, 0)),
            pl.BlockSpec((1, nclass), lambda i: (0, 0)),
        ],
        out_specs=pl.BlockSpec((tm, nclass), lambda i: (i, 0)),
        compiler_params=pltpu.CompilerParams(
            dimension_semantics=("parallel",),
            vmem_limit_bytes=int(budget)),
    )(xp, w1c, scale, shift, w2c, b2v)

    return out_p if n_p == n else out_p[:n]


def reference_forward(x, w1_t, b1, gamma, beta, w2_t, b2, use_bn=True):
    h = x @ w1_t + b1.reshape(1, -1)
    if use_bn:
        mean = jnp.mean(h, axis=0, keepdims=True)
        var = jnp.mean((h - mean) ** 2, axis=0, keepdims=True)
        h = (h - mean) / jnp.sqrt(var + BN_EPS)
        h = h * gamma.reshape(1, -1) + beta.reshape(1, -1)
    h = jnp.maximum(h, 0.0)
    return h @ w2_t + b2.reshape(1, -1)


def _make_params(key, nfeat, nhid, nclass):
    kw1, kb1, kw2, kb2 = jax.random.split(key, 4)
    bound1 = 1.0 / jnp.sqrt(nfeat)
    bound2 = 1.0 / jnp.sqrt(nhid)
    w1_t = jax.random.uniform(kw1, (nfeat, nhid), jnp.float32, -bound1, bound1)
    b1 = jax.random.uniform(kb1, (nhid,), jnp.float32, -bound1, bound1)
    w2_t = jax.random.uniform(kw2, (nhid, nclass), jnp.float32, -bound2, bound2)
    b2 = jax.random.uniform(kb2, (nclass,), jnp.float32, -bound2, bound2)
    gamma = jnp.ones((nhid,), jnp.float32)   # BatchNorm1d default affine init
    beta = jnp.zeros((nhid,), jnp.float32)
    return w1_t, b1, gamma, beta, w2_t, b2


if __name__ == "__main__":
    key = jax.random.PRNGKey(0)
    k_xs, k_xl, k_ps, k_pl = jax.random.split(key, 4)

    # --- small shapes: exercises the fused single-call (f32) path -----------
    N, nfeat, nhid, nclass = 8, 16, 32, 8
    x = jax.random.normal(k_xs, (N, nfeat), dtype=jnp.float32)
    params = _make_params(k_ps, nfeat, nhid, nclass)
    out = jax.block_until_ready(mlp_forward(x, *params))
    ref = reference_forward(x, *params)
    assert out.shape == (N, nclass)
    assert jnp.allclose(out, ref, atol=5e-4, rtol=5e-4), "fused path mismatch"

    # --- larger ragged shapes: exercises the tiled bf16 two-pass path -------
    N2, nf2, nh2, nc2 = 300, 96, 160, 10
    x2 = jax.random.normal(k_xl, (N2, nf2), dtype=jnp.float32)
    params2 = _make_params(k_pl, nf2, nh2, nc2)
    out2 = jax.block_until_ready(mlp_forward(x2, *params2, force_two_pass=True))
    ref2 = reference_forward(x2, *params2)
    assert out2.shape == (N2, nc2)
    assert jnp.allclose(out2, ref2, atol=3e-2, rtol=3e-2), "tiled path mismatch"

    print("KERNEL_OK")
</pallas_src>

<mosaic_0001>
module attributes {stable_mosaic.version = 11 : i64} {
  func.func @_fused_kernel(%arg0: i32, %arg1: memref<8x16xf32, #tpu.memory_space<vmem>>, %arg2: memref<16x32xf32, #tpu.memory_space<vmem>>, %arg3: memref<1x32xf32, #tpu.memory_space<vmem>>, %arg4: memref<1x32xf32, #tpu.memory_space<vmem>>, %arg5: memref<1x32xf32, #tpu.memory_space<vmem>>, %arg6: memref<32x8xf32, #tpu.memory_space<vmem>>, %arg7: memref<1x8xf32, #tpu.memory_space<vmem>>, %arg8: memref<8x8xf32, #tpu.memory_space<vmem>>) attributes {dimension_semantics = [#tpu.dimension_semantics<arbitrary>], iteration_bounds = array<i64: 1>, scalar_prefetch = 0 : i64, scratch_operands = 0 : i64, tpu.core_type = #tpu.core_type<tc>, window_params = [{pipeline_mode = #tpu.pipeline_mode<synchronous>, transform_indices = @transform_0, window_bounds = array<i64: 8, 16>}, {pipeline_mode = #tpu.pipeline_mode<synchronous>, transform_indices = @transform_1, window_bounds = array<i64: 16, 32>}, {pipeline_mode = #tpu.pipeline_mode<synchronous>, transform_indices = @transform_2, window_bounds = array<i64: 1, 32>}, {pipeline_mode = #tpu.pipeline_mode<synchronous>, transform_indices = @transform_3, window_bounds = array<i64: 1, 32>}, {pipeline_mode = #tpu.pipeline_mode<synchronous>, transform_indices = @transform_4, window_bounds = array<i64: 1, 32>}, {pipeline_mode = #tpu.pipeline_mode<synchronous>, transform_indices = @transform_5, window_bounds = array<i64: 32, 8>}, {pipeline_mode = #tpu.pipeline_mode<synchronous>, transform_indices = @transform_6, window_bounds = array<i64: 1, 8>}, {pipeline_mode = #tpu.pipeline_mode<synchronous>, transform_indices = @transform_7, window_bounds = array<i64: 8, 8>}]} {
    %c0 = arith.constant 0 : index
    %c0_0 = arith.constant 0 : index
    %0 = vector.load %arg1[%c0, %c0_0] : memref<8x16xf32, #tpu.memory_space<vmem>>, vector<8x16xf32>
    %c0_1 = arith.constant 0 : index
    %c0_2 = arith.constant 0 : index
    %1 = vector.load %arg2[%c0_1, %c0_2] : memref<16x32xf32, #tpu.memory_space<vmem>>, vector<16x32xf32>
    %cst = arith.constant dense<0.000000e+00> : vector<8x32xf32>
    %2 = tpu.matmul %0, %1, %cst {dimension_numbers = #tpu.dot_dimension_numbers<[1], [0], [0], [1], [0, 0, 1, 1], [], []>} : vector<8x16xf32>, vector<16x32xf32>, vector<8x32xf32> -> vector<8x32xf32>
    %c0_3 = arith.constant 0 : index
    %c0_4 = arith.constant 0 : index
    %3 = vector.load %arg3[%c0_3, %c0_4] : memref<1x32xf32, #tpu.memory_space<vmem>>, vector<1x32xf32>
    %4 = vector.broadcast %3 : vector<1x32xf32> to vector<8x32xf32>
    %5 = arith.addf %2, %4 : vector<8x32xf32>
    %cst_5 = arith.constant dense<0.000000e+00> : vector<32xf32>
    %6 = vector.multi_reduction <add>, %5, %cst_5 [0] : vector<8x32xf32> to vector<32xf32>
    %7 = vector.shape_cast %6 : vector<32xf32> to vector<1x32xf32>
    %cst_6 = arith.constant 8.000000e+00 : f32
    %8 = vector.broadcast %cst_6 : f32 to vector<1x32xf32>
    %9 = arith.divf %7, %8 : vector<1x32xf32>
    %10 = vector.broadcast %9 : vector<1x32xf32> to vector<8x32xf32>
    %11 = arith.subf %5, %10 : vector<8x32xf32>
    %12 = arith.mulf %11, %11 : vector<8x32xf32>
    %cst_7 = arith.constant dense<0.000000e+00> : vector<32xf32>
    %13 = vector.multi_reduction <add>, %12, %cst_7 [0] : vector<8x32xf32> to vector<32xf32>
    %14 = vector.shape_cast %13 : vector<32xf32> to vector<1x32xf32>
    %cst_8 = arith.constant 8.000000e+00 : f32
    %15 = vector.broadcast %cst_8 : f32 to vector<1x32xf32>
    %16 = arith.divf %14, %15 : vector<1x32xf32>
    %17 = vector.broadcast %9 : vector<1x32xf32> to vector<8x32xf32>
    %18 = arith.subf %5, %17 : vector<8x32xf32>
    %cst_9 = arith.constant 9.99999974E-6 : f32
    %19 = vector.broadcast %cst_9 : f32 to vector<1x32xf32>
    %20 = arith.addf %16, %19 : vector<1x32xf32>
    %21 = math.rsqrt %20 : vector<1x32xf32>
    %22 = vector.broadcast %21 : vector<1x32xf32> to vector<8x32xf32>
    %23 = arith.mulf %18, %22 : vector<8x32xf32>
    %c0_10 = arith.constant 0 : index
    %c0_11 = arith.constant 0 : index
    %24 = vector.load %arg4[%c0_10, %c0_11] : memref<1x32xf32, #tpu.memory_space<vmem>>, vector<1x32xf32>
    %25 = vector.broadcast %24 : vector<1x32xf32> to vector<8x32xf32>
    %26 = arith.mulf %23, %25 : vector<8x32xf32>
    %c0_12 = arith.constant 0 : index
    %c0_13 = arith.constant 0 : index
    %27 = vector.load %arg5[%c0_12, %c0_13] : memref<1x32xf32, #tpu.memory_space<vmem>>, vector<1x32xf32>
    %28 = vector.broadcast %27 : vector<1x32xf32> to vector<8x32xf32>
    %29 = arith.addf %26, %28 : vector<8x32xf32>
    %cst_14 = arith.constant 0.000000e+00 : f32
    %30 = vector.broadcast %cst_14 : f32 to vector<8x32xf32>
    %31 = arith.maximumf %29, %30 : vector<8x32xf32>
    %c0_15 = arith.constant 0 : index
    %c0_16 = arith.constant 0 : index
    %32 = vector.load %arg6[%c0_15, %c0_16] : memref<32x8xf32, #tpu.memory_space<vmem>>, vector<32x8xf32>
    %cst_17 = arith.constant dense<0.000000e+00> : vector<8x8xf32>
    %33 = tpu.matmul %31, %32, %cst_17 {dimension_numbers = #tpu.dot_dimension_numbers<[1], [0], [0], [1], [0, 0, 1, 1], [], []>} : vector<8x32xf32>, vector<32x8xf32>, vector<8x8xf32> -> vector<8x8xf32>
    %c0_18 = arith.constant 0 : index
    %c0_19 = arith.constant 0 : index
    %34 = vector.load %arg7[%c0_18, %c0_19] : memref<1x8xf32, #tpu.memory_space<vmem>>, vector<1x8xf32>
    %35 = vector.broadcast %34 : vector<1x8xf32> to vector<8x8xf32>
    %36 = arith.addf %33, %35 : vector<8x8xf32>
    %c0_20 = arith.constant 0 : index
    %c0_21 = arith.constant 0 : index
    %37 = vector.load %arg8[%c0_20, %c0_21] : memref<8x8xf32, #tpu.memory_space<vmem>>, vector<8x8xf32>
    tpu.vector_store %arg8[%c0_20, %c0_21], %36 {strides = array<i32>} : memref<8x8xf32, #tpu.memory_space<vmem>>, vector<8x8xf32>,
    return
  }
  func.func @transform_0(%arg0: i32) -> (i32, i32) {
    %c0_i32 = arith.constant 0 : i32
    %c0_i32_0 = arith.constant 0 : i32
    %c0_i32_1 = arith.constant 0 : i32
    return %c0_i32, %c0_i32_0 : i32, i32
  }
  func.func @transform_1(%arg0: i32) -> (i32, i32) {
    %c0_i32 = arith.constant 0 : i32
    %c0_i32_0 = arith.constant 0 : i32
    %c0_i32_1 = arith.constant 0 : i32
    return %c0_i32, %c0_i32_0 : i32, i32
  }
  func.func @transform_2(%arg0: i32) -> (i32, i32) {
    %c0_i32 = arith.constant 0 : i32
    %c0_i32_0 = arith.constant 0 : i32
    %c0_i32_1 = arith.constant 0 : i32
    return %c0_i32, %c0_i32_0 : i32, i32
  }
  func.func @transform_3(%arg0: i32) -> (i32, i32) {
    %c0_i32 = arith.constant 0 : i32
    %c0_i32_0 = arith.constant 0 : i32
    %c0_i32_1 = arith.constant 0 : i32
    return %c0_i32, %c0_i32_0 : i32, i32
  }
  func.func @transform_4(%arg0: i32) -> (i32, i32) {
    %c0_i32 = arith.constant 0 : i32
    %c0_i32_0 = arith.constant 0 : i32
    %c0_i32_1 = arith.constant 0 : i32
    return %c0_i32, %c0_i32_0 : i32, i32
  }
  func.func @transform_5(%arg0: i32) -> (i32, i32) {
    %c0_i32 = arith.constant 0 : i32
    %c0_i32_0 = arith.constant 0 : i32
    %c0_i32_1 = arith.constant 0 : i32
    return %c0_i32, %c0_i32_0 : i32, i32
  }
  func.func @transform_6(%arg0: i32) -> (i32, i32) {
    %c0_i32 = arith.constant 0 : i32
    %c0_i32_0 = arith.constant 0 : i32
    %c0_i32_1 = arith.constant 0 : i32
    return %c0_i32, %c0_i32_0 : i32, i32
  }
  func.func @transform_7(%arg0: i32) -> (i32, i32) {
    %c0_i32 = arith.constant 0 : i32
    %c0_i32_0 = arith.constant 0 : i32
    %c0_i32_1 = arith.constant 0 : i32
    return %c0_i32, %c0_i32_0 : i32, i32
  }
}

</mosaic_0001>

<llo_original>
// kernel: mlp_forward.1
$region0: #{mlp_forward.1}
  #allocation0 [shape = 'u32[]', space=smem, size = 0x4, offset = 0x4, fixed_abs, tag = 'smem constant byte address 0x4 - core index']
  #allocation1 [shape = 'u32[72,128]{1,0:T(1,128)}', space=vmem, size = 0x9000, scoped, tag = 'internal scratch']
  %s0 = inlined_call_operand.vmem [shape: f32[8,16], index: 0, kind: input, shape index: {}]
  %s1 = inlined_call_operand.vmem [shape: f32[16,32], index: 1, kind: input, shape index: {}]
  %s2 = inlined_call_operand.vmem [shape: f32[1,32], index: 2, kind: input, shape index: {}]
  %s3 = inlined_call_operand.vmem [shape: f32[1,32], index: 3, kind: input, shape index: {}]
  %s4 = inlined_call_operand.vmem [shape: f32[1,32], index: 4, kind: input, shape index: {}]
  %s5 = inlined_call_operand.vmem [shape: f32[32,8], index: 5, kind: input, shape index: {}]
  %s6 = inlined_call_operand.vmem [shape: f32[1,8], index: 6, kind: input, shape index: {}]
  %s7 = inlined_call_operand.hbm [shape: f32[8,8], index: 7, kind: output, shape index: {}]
  %s8 = sld [smem:[#allocation0]]
  $region38: #{mlp_forward.1} parent=0
    _
  %s10 = ssub.s32 1, %s8
  %s11 = scalar_select 0, %s10, %s8
  $region1: #{mlp_forward.1} parent=0
    #allocation2 [shape = 'u8[4096]{0}', space=vmem, size = 0x1000, scoped, tag = 'output window, operand 0, single buffered']
    #allocation3 [shape = 's32[1]{0}', space=sflag, size = 0x4, scoped, tag = 'scoped memory for mlp_forward.1']
    %12 = vsyncpa [#allocation3], 0
    // Predicated region
    $region2: #{mlp_forward.1} parent=1 // pred_check
      _
    $region3: #{mlp_forward.1} parent=1 // pred_check_branch
      %14 = sbr.rel (0) target = $region5
    $region4: #{mlp_forward.1} parent=1 // pred_region
      _
    $region5: #{mlp_forward.1} parent=1 // pred_fallthru
      _
    // Predicated region
    $region6: #{mlp_forward.1} parent=1 // pred_check
      _
    $region7: #{mlp_forward.1} parent=1 // pred_check_branch
      %16 = sbr.rel (0) target = $region9
    $region8: #{mlp_forward.1} parent=1 // pred_region
      _
    $region9: #{mlp_forward.1} parent=1 // pred_fallthru
      _
    // Predicated region
    $region10: #{mlp_forward.1} parent=1 // pred_check
      _
    $region11: #{mlp_forward.1} parent=1 // pred_check_branch
      %18 = sbr.rel (0) target = $region13
    $region12: #{mlp_forward.1} parent=1 // pred_region
      _
    $region13: #{mlp_forward.1} parent=1 // pred_fallthru
      _
    // Predicated region
    $region14: #{mlp_forward.1} parent=1 // pred_check
      _
    $region15: #{mlp_forward.1} parent=1 // pred_check_branch
      %20 = sbr.rel (0) target = $region17
    $region16: #{mlp_forward.1} parent=1 // pred_region
      _
    $region17: #{mlp_forward.1} parent=1 // pred_fallthru
      _
    // Predicated region
    $region18: #{mlp_forward.1} parent=1 // pred_check
      _
    $region19: #{mlp_forward.1} parent=1 // pred_check_branch
      %22 = sbr.rel (0) target = $region21
    $region20: #{mlp_forward.1} parent=1 // pred_region
      _
    $region21: #{mlp_forward.1} parent=1 // pred_fallthru
      _
    // Predicated region
    $region22: #{mlp_forward.1} parent=1 // pred_check
      _
    $region23: #{mlp_forward.1} parent=1 // pred_check_branch
      %24 = sbr.rel (0) target = $region25
    $region24: #{mlp_forward.1} parent=1 // pred_region
      _
    $region25: #{mlp_forward.1} parent=1 // pred_fallthru
      _
    // Predicated region
    $region26: #{mlp_forward.1} parent=1 // pred_check
      _
    $region27: #{mlp_forward.1} parent=1 // pred_check_branch
      %26 = sbr.rel (0) target = $region29
    $region28: #{mlp_forward.1} parent=1 // pred_region
      _
    $region29: #{mlp_forward.1} parent=1 // pred_fallthru
      _
    %v27 = vld [vmem:[%s0] sm:$0xff]
    %v28 = vld [vmem:[%s1] sm:$0xff]
    %v29 = vld [vmem:[%s1 + $0x8] sm:$0xff]
    %v30 = vld [vmem:[%s2] sm:$0x1]
    %v32 = vperm.slane %v30, 0
    %vm34 = vcmask 130048
    %v36 = vsel %vm34, %v27, 0
    %38 = vmatpush.msra.mxu0 0.0
    %39 = vmatpush.msra.mxu0 0.0
    %40 = vmatpush.msra.mxu0 0.0
    %41 = vmatpush.msra.mxu0 0.0
    %42 = vmatpush.msra.mxu0 0.0
    %43 = vmatpush.msra.mxu0 0.0
    %44 = vmatpush.msra.mxu0 0.0
    %45 = vmatpush.msra.mxu0 0.0
    %46 = vmatpush.msra.mxu0 0.0
    %47 = vmatpush.msra.mxu0 0.0
    %48 = vmatpush.msra.mxu0 0.0
    %49 = vmatpush.msra.mxu0 0.0
    %50 = vmatpush.msra.mxu0 0.0
    %51 = vmatpush.msra.mxu0 0.0
    %52 = vmatpush.msra.mxu0 %v29
    %53 = vmatpush.msra.mxu0 %v28
    %54 = vmatmul.f32.gmra.mxu0 %v36
    %v55 = vpop.f32.mrf.mxu0
    %v56 = vadd.f32 %v32, %v55
    %57 = vdwg.mxu0
    %vm58 = vcmask 261120
    %v59 = vsel %vm58, %v56, 0.0
    %v60 = vrot.slane %v59, 4
    %v61 = vadd.f32 %v59, %v60
    %v62 = vrot.slane %v61, 2
    %v63 = vadd.f32 %v61, %v62
    %v64 = vrot.slane %v63, 1
    %v65 = vadd.f32 %v63, %v64
    %v66 = vrcp.pop 8.0
    %v67 = vmul.f32 8.0, %v66
    %v68 = vsub.f32 1.0, %v67
    %v69 = vmul.f32 %v66, %v68
    %v70 = vadd.f32 %v66, %v69
    %vm71 = vweird.f32 %v66
    %v72 = vsel %vm71, %v66, %v70
    %v73 = vmul.f32 %v65, %v72
    %v74 = vsub.f32 %v56, %v73
    %v75 = vmul.f32 %v74, %v74
    %v76 = vsel %vm58, %v75, 0.0
    %v77 = vrot.slane %v76, 4
    %v78 = vadd.f32 %v76, %v77
    %v79 = vrot.slane %v78, 2
    %v80 = vadd.f32 %v78, %v79
    %v81 = vrot.slane %v80, 1
    %v82 = vadd.f32 %v80, %v81
    %v83 = vmul.f32 %v82, %v72
    %v84 = vadd.f32 %v83, 1e-05
    %v85 = vrsqrt.pop %v84
    %v86 = vmul.f32 %v85, %v84
    %v87 = vmul.f32 %v86, %v85
    %v88 = vmul.f32 0.5, %v87
    %v89 = vsub.f32 1.5, %v88
    %v90 = vmul.f32 %v85, %v89
    %vm91 = vweird.f32 %v84
    %vm92 = vweird.f32 %v85
    %vm93 = vmor %vm91, %vm92
    %v94 = vsel %vm93, %v85, %v90
    %v95 = vmul.f32 %v74, %v94
    %v96 = vld [vmem:[%s3] sm:$0x1]
    %v98 = vperm.slane %v96, 0
    %v100 = vmul.f32 %v95, %v98
    %v101 = vld [vmem:[%s4] sm:$0x1]
    %v103 = vperm.slane %v101, 0
    %v105 = vadd.f32 %v100, %v103
    %v106 = vmax.f32 %v105, 0.0
    %v107 = vld [vmem:[%s5] sm:$0xff]
    %v108 = vld [vmem:[%s5 + $0x8] sm:$0xff]
    %v109 = vld [vmem:[%s5 + $0x10] sm:$0xff]
    %v110 = vld [vmem:[%s5 + $0x18] sm:$0xff]
    %v111 = vld [vmem:[%s6] sm:$0x1]
    %v113 = vperm.slane %v111, 0
    %v116 = vsel %vm58, %v106, 0
    %118 = vmatpush.msra.mxu0 0.0
    %119 = vmatpush.msra.mxu0 0.0
    %120 = vmatpush.msra.mxu0 0.0
    %121 = vmatpush.msra.mxu0 0.0
    %122 = vmatpush.msra.mxu0 0.0
    %123 = vmatpush.msra.mxu0 0.0
    %124 = vmatpush.msra.mxu0 0.0
    %125 = vmatpush.msra.mxu0 0.0
    %126 = vmatpush.msra.mxu0 0.0
    %127 = vmatpush.msra.mxu0 0.0
    %128 = vmatpush.msra.mxu0 0.0
    %129 = vmatpush.msra.mxu0 0.0
    %130 = vmatpush.msra.mxu0 %v110
    %131 = vmatpush.msra.mxu0 %v109
    %132 = vmatpush.msra.mxu0 %v108
    %133 = vmatpush.msra.mxu0 %v107
    %134 = vmatmul.f32.gmra.mxu0 %v116
    %v135 = vpop.f32.mrf.mxu0
    %v136 = vadd.f32 %v113, %v135
    %137 = vdwg.mxu0
    %vm138 = vcmask 64512
    %139 = vst.msk [vmem:[#allocation2] sm:$0xff] %vm138, %v136
    // Predicated region
    $region30: #{mlp_forward.1} parent=1 // pred_check
      _
    $region31: #{mlp_forward.1} parent=1 // pred_check_branch
      %141 = sbr.rel (0) target = $region33
    $region32: #{mlp_forward.1} parent=1 // pred_region
      %143 = vsyncadd [#allocation3], 0
      %s145 = sshll.u32 [#allocation2], 4
      %s146 = int_to_ptr.vmem [resolvable:$true] %s145
      %s147 = sshll.u32 %s7, 4
      %s148 = int_to_ptr.hbm [resolvable:$true] %s147
      %150 = dma.vmem_to_hbm [thread:$0]  %s146, 128, %s148, [#allocation3]
    $region33: #{mlp_forward.1} parent=1 // pred_fallthru
      _
    // Predicated region
    $region34: #{mlp_forward.1} parent=1 // pred_check
      _
    $region35: #{mlp_forward.1} parent=1 // pred_check_branch
      %152 = sbr.rel (0) target = $region37
    $region36: #{mlp_forward.1} parent=1 // pred_region
      %154 = dma.done [#allocation3], 128
    $region37: #{mlp_forward.1} parent=1 // pred_fallthru
      _
    %155 = vsyncpa [#allocation3], 1

</llo_original>
